<compile_context>
chip_gen: v5e
topology: v5e:2x2
jax: 0.10.0
libtpu: 0.0.40
codegen_flags: <defaults>
</compile_context>

<pallas_src>
import jax
import jax.numpy as jnp
from jax.experimental import pallas as pl
from jax.experimental.pallas import tpu as pltpu


def _round_up(x, m):
    return ((x + m - 1) // m) * m


def _transpose2d_kernel(x_ref, o_ref):
    # x_ref: (t_tile, c_tile) in VMEM ; o_ref: (c_tile, t_tile) in VMEM.
    # Single dense 2-D transpose -> native XLU transpose with (8,128)-aligned
    # vregs on both sides; no unroll, no oversized live value.
    o_ref[...] = x_ref[...].T


def _choose_tiles(T, C, itemsize):
    """Pick legal, lane-friendly (t_tile, c_tile) for the (T, C) -> (C, T) transpose.

    Legality: each tile is either a multiple of 128 or the full dimension, so
    both the input block (t_tile, c_tile) and output block (c_tile, t_tile)
    satisfy the (8, 128) block constraints.  Policy (per review): keep the C
    tile as large/contiguous as possible (bigger input DMA segments), shrink
    T first; caps at 1024 with a ~4 MiB per-block budget, padding-aware.
    """
    budget = 4 * 1024 * 1024  # bytes per block per operand (x2 ops x2 buffers live)
    cap = 1024

    t_tile = T if T <= 128 else min(cap, (T // 128) * 128)
    c_tile = C if C <= 128 else min(cap, (C // 128) * 128)

    def block_bytes(tt, cc):
        # VMEM footprint including (8,128) padding of small/full dims.
        in_b = _round_up(tt, 8) * _round_up(cc, 128) * itemsize
        out_b = _round_up(cc, 8) * _round_up(tt, 128) * itemsize
        return max(in_b, out_b)

    while block_bytes(t_tile, c_tile) > budget and (t_tile > 128 or c_tile > 128):
        if t_tile > 128:
            t_tile -= 128  # stays a multiple of 128, >= 128
        else:
            c_tile -= 128

    # Megacore: if a single block covers everything but one axis can be split
    # into two legal 128-multiple tiles, split it so v7x's 2 TCs share work.
    if pl.cdiv(T, t_tile) == 1 and pl.cdiv(C, c_tile) == 1:
        if t_tile >= 256 and t_tile % 256 == 0:
            t_tile //= 2
        elif c_tile >= 256 and c_tile % 256 == 0:
            c_tile //= 2

    return t_tile, c_tile


@jax.jit
def rotate3d(x):
    """(T, B, D) -> (B, D, T), matching torch's x.permute(1, 2, 0)."""
    T, B, D = x.shape
    C = B * D
    itemsize = jnp.dtype(x.dtype).itemsize

    # Free, contiguous reshape: the permute is a plain 2-D transpose of this.
    x2 = x.reshape(T, C)

    t_tile, c_tile = _choose_tiles(T, C, itemsize)
    grid = (pl.cdiv(C, c_tile), pl.cdiv(T, t_tile))

    cost = pl.CostEstimate(
        flops=0,
        transcendentals=0,
        bytes_accessed=2 * x.size * itemsize,  # pure data movement: read + write
    )

    out2 = pl.pallas_call(
        _transpose2d_kernel,
        out_shape=jax.ShapeDtypeStruct((C, T), x.dtype),
        grid_spec=pltpu.PrefetchScalarGridSpec(
            num_scalar_prefetch=0,
            grid=grid,
            # Input (T, C): second-minor T tile (128-multiple or full T),
            # lane axis C tile (128-multiple or full C).
            in_specs=[pl.BlockSpec((t_tile, c_tile), lambda c, t: (t, c))],
            # Output (C, T): lane axis is the T tile -> lane-dense stores.
            out_specs=pl.BlockSpec((c_tile, t_tile), lambda c, t: (c, t)),
        ),
        compiler_params=pltpu.CompilerParams(
            # Disjoint tiles per step -> both axes parallel (megacore split).
            dimension_semantics=("parallel", "parallel"),
            vmem_limit_bytes=32 * 1024 * 1024,
        ),
        cost_estimate=cost,
    )(x2)

    # Free, contiguous reshape back to the module's output layout.
    return out2.reshape(B, D, T)


if __name__ == "__main__":
    key = jax.random.PRNGKey(0)

    # Case 1: tiny shape matching the module's seq-first (T, B, D) layout.
    T, B, D = 8, 2, 32
    x = jax.random.normal(key, (T, B, D), dtype=jnp.float32)
    out = jax.block_until_ready(rotate3d(x))
    assert out.shape == (B, D, T), out.shape
    assert out.dtype == x.dtype
    assert jnp.array_equal(out, jnp.transpose(x, (1, 2, 0)))

    # Case 2: partial boundary T block (T=200 -> two 128-wide T tiles).
    T2, B2, D2 = 200, 4, 256
    x2 = jax.random.normal(key, (T2, B2, D2), dtype=jnp.float32)
    out2 = jax.block_until_ready(rotate3d(x2))
    assert jnp.array_equal(out2, jnp.transpose(x2, (1, 2, 0)))

    # Case 3: full-C (B*D=640) single-column block, D not a power of two.
    T3, B3, D3 = 128, 2, 320
    x3 = jax.random.normal(key, (T3, B3, D3), dtype=jnp.float32)
    out3 = jax.block_until_ready(rotate3d(x3))
    assert jnp.array_equal(out3, jnp.transpose(x3, (1, 2, 0)))

    # Case 4: tiling over both axes (C=2048 -> two 1024 tiles, T=256 tiles).
    T4, B4, D4 = 256, 4, 512
    x4 = jax.random.normal(key, (T4, B4, D4), dtype=jnp.float32)
    out4 = jax.block_until_ready(rotate3d(x4))
    assert jnp.array_equal(out4, jnp.transpose(x4, (1, 2, 0)))

    # Case 5: bf16 path (packed sublane layout), aligned single block.
    T5, B5, D5 = 128, 2, 64
    x5 = jax.random.normal(key, (T5, B5, D5), dtype=jnp.bfloat16)
    out5 = jax.block_until_ready(rotate3d(x5))
    assert jnp.array_equal(out5, jnp.transpose(x5, (1, 2, 0)))

    print("KERNEL_OK")
</pallas_src>

<mosaic_0001>
module attributes {stable_mosaic.version = 11 : i64} {
  func.func @_transpose2d_kernel(%arg0: i32, %arg1: i32, %arg2: memref<8x64xf32, #tpu.memory_space<vmem>>, %arg3: memref<64x8xf32, #tpu.memory_space<vmem>>) attributes {dimension_semantics = [#tpu.dimension_semantics<parallel>, #tpu.dimension_semantics<parallel>], iteration_bounds = array<i64: 1, 1>, scalar_prefetch = 0 : i64, scratch_operands = 0 : i64, tpu.core_type = #tpu.core_type<tc>, window_params = [{transform_indices = @transform_0, window_bounds = array<i64: 8, 64>}, {transform_indices = @transform_1, window_bounds = array<i64: 64, 8>}]} {
    %c0 = arith.constant 0 : index
    %c0_0 = arith.constant 0 : index
    %0 = vector.load %arg2[%c0, %c0_0] : memref<8x64xf32, #tpu.memory_space<vmem>>, vector<8x64xf32>
    %1 = tpu.transpose %0, [1, 0] : vector<8x64xf32> -> vector<64x8xf32>
    %c0_1 = arith.constant 0 : index
    %c0_2 = arith.constant 0 : index
    %2 = vector.load %arg3[%c0_1, %c0_2] : memref<64x8xf32, #tpu.memory_space<vmem>>, vector<64x8xf32>
    tpu.vector_store %arg3[%c0_1, %c0_2], %1 {strides = array<i32>} : memref<64x8xf32, #tpu.memory_space<vmem>>, vector<64x8xf32>,
    return
  }
  func.func @transform_0(%arg0: i32, %arg1: i32) -> (i32, i32) {
    %c0_i32 = arith.constant 0 : i32
    return %arg1, %arg0 : i32, i32
  }
  func.func @transform_1(%arg0: i32, %arg1: i32) -> (i32, i32) {
    %c0_i32 = arith.constant 0 : i32
    return %arg0, %arg1 : i32, i32
  }
}

</mosaic_0001>

<llo_original>
// kernel: rotate3d.1
$region0: #{rotate3d.1}
  #allocation0 [shape = 'u32[]', space=smem, size = 0x4, offset = 0x4, fixed_abs, tag = 'smem constant byte address 0x4 - core index']
  #allocation1 [shape = 'u32[72,128]{1,0:T(1,128)}', space=vmem, size = 0x9000, scoped, tag = 'internal scratch']
  %s0 = inlined_call_operand.vmem [shape: f32[8,64], index: 0, kind: input, shape index: {}]
  %s1 = inlined_call_operand.vmem [shape: f32[64,8], index: 1, kind: output, shape index: {}]
  %s2 = sld [smem:[#allocation0]]
  $region14: #{rotate3d.1} parent=0
    _
  %s4 = ssub.s32 1, %s2
  %s5 = scalar_select 0, %s4, %s2
  // Predicated region
  $region2: #{rotate3d.1} parent=0 // pred_check
    _
  $region3: #{rotate3d.1} parent=0 // pred_check_branch
    %7 = sbr.rel (0) target = $region5
  $region4: #{rotate3d.1} parent=0 // pred_region
    _
  $region5: #{rotate3d.1} parent=0 // pred_fallthru
    _
  %v8 = vld [vmem:[%s0] sm:$0xff]
  %9 = vxpose.xlu0.b32.start [1/16] %v8, 128
  %10 = vxpose.xlu0.b32.cont [2/16] 0.0, 128
  %11 = vxpose.xlu0.b32.cont [3/16] 0.0, 128
  %12 = vxpose.xlu0.b32.cont [4/16] 0.0, 128
  %13 = vxpose.xlu0.b32.cont [5/16] 0.0, 128
  %14 = vxpose.xlu0.b32.cont [6/16] 0.0, 128
  %15 = vxpose.xlu0.b32.cont [7/16] 0.0, 128
  %16 = vxpose.xlu0.b32.cont [8/16] 0.0, 128
  %17 = vxpose.xlu0.b32.cont [9/16] 0.0, 128
  %18 = vxpose.xlu0.b32.cont [10/16] 0.0, 128
  %19 = vxpose.xlu0.b32.cont [11/16] 0.0, 128
  %20 = vxpose.xlu0.b32.cont [12/16] 0.0, 128
  %21 = vxpose.xlu0.b32.cont [13/16] 0.0, 128
  %22 = vxpose.xlu0.b32.cont [14/16] 0.0, 128
  %23 = vxpose.xlu0.b32.cont [15/16] 0.0, 128
  %24 = vxpose.xlu0.b32.end [16/16] 0.0, 128
  %v25 = vpop.trf.xlu0
  %v26 = vpop.trf.xlu0
  %v27 = vpop.trf.xlu0
  %v28 = vpop.trf.xlu0
  %v29 = vpop.trf.xlu0
  %v30 = vpop.trf.xlu0
  %v31 = vpop.trf.xlu0
  %v32 = vpop.trf.xlu0
  %v33 = vpop.trf.xlu0
  %v34 = vpop.trf.xlu0
  %v35 = vpop.trf.xlu0
  %v36 = vpop.trf.xlu0
  %v37 = vpop.trf.xlu0
  %v38 = vpop.trf.xlu0
  %v39 = vpop.trf.xlu0
  %v40 = vpop.trf.xlu0
  %vm41 = vcmask 64512
  %42 = vst.msk [vmem:[%s1] sm:$0xff] %vm41, %v25
  %43 = vst.msk [vmem:[%s1 + $0x8] sm:$0xff] %vm41, %v26
  %44 = vst.msk [vmem:[%s1 + $0x10] sm:$0xff] %vm41, %v27
  %45 = vst.msk [vmem:[%s1 + $0x18] sm:$0xff] %vm41, %v28
  %46 = vst.msk [vmem:[%s1 + $0x20] sm:$0xff] %vm41, %v29
  %47 = vst.msk [vmem:[%s1 + $0x28] sm:$0xff] %vm41, %v30
  %48 = vst.msk [vmem:[%s1 + $0x30] sm:$0xff] %vm41, %v31
  %49 = vst.msk [vmem:[%s1 + $0x38] sm:$0xff] %vm41, %v32
  // Predicated region
  $region6: #{rotate3d.1} parent=0 // pred_check
    _
  $region7: #{rotate3d.1} parent=0 // pred_check_branch
    %51 = sbr.rel (0) target = $region9
  $region8: #{rotate3d.1} parent=0 // pred_region
    _
  $region9: #{rotate3d.1} parent=0 // pred_fallthru
    _
  // Predicated region
  $region10: #{rotate3d.1} parent=0 // pred_check
    _
  $region11: #{rotate3d.1} parent=0 // pred_check_branch
    %53 = sbr.rel (0) target = $region13
  $region12: #{rotate3d.1} parent=0 // pred_region
    _
  $region13: #{rotate3d.1} parent=0 // pred_fallthru
    _

</llo_original>
